<compile_context>
chip_gen: v6e
topology: v6e:2x2x1
jax: 0.10.0
libtpu: 0.0.40
codegen_flags: <defaults>
</compile_context>

<pallas_src>
import functools

import jax
import jax.numpy as jnp
from jax import lax
from jax.experimental import pallas as pl
from jax.experimental.pallas import tpu as pltpu


def gcn_kernel(a_big_ref, x_ref, wk_ref, b_ref, o_ref, *, compute_dtype):
    # a_big_ref : (T*N, T*N)        kron(I_T, A_norm), resident in VMEM
    # x_ref     : (B*C_in, T*N)     flattened NCHW input (row = b*C_in + c, col = t*N + n)
    # wk_ref    : (B*C_out, B*C_in) kron(I_B, W^T), resident
    # b_ref     : (B*C_out, 1)      bias tiled over batches, f32 (epilogue stays f32)
    # o_ref     : (B*C_out, T*N)    flattened NCHW output (row = b*C_out + o, col = t*N + n)

    # Cast under the DMA (VPU) instead of a separate XLA convert pass in HBM.
    x = x_ref[...].astype(compute_dtype)

    # Step 1 — graph aggregation over the fused (t, n) lane axis. Contract x's last dim against
    # a_big's last dim so the effective A^T is done by the MXU, not a wrapper transpose:
    #   z[(b,c), (t,n)] = sum_k x[(b,c), (t,k)] * A_norm[n, k]
    z = lax.dot_general(
        x, a_big_ref[...],
        dimension_numbers=(((1,), (1,)), ((), ())),
        preferred_element_type=jnp.float32,
    )                                                    # (B*C_in, T*N), f32 acc

    # Step 2 — channel mix with the true W^T, block-diagonal over the batch:
    #   y[(b,o), (t,n)] = sum_c W[c, o] * z[(b,c), (t,n)]
    y = jnp.dot(wk_ref[...], z.astype(wk_ref.dtype),
                preferred_element_type=jnp.float32)      # (B*C_out, T*N), f32 acc

    # Epilogue in f32: bias + ReLU, cast on store (lane-dense, unmasked vst).
    o_ref[...] = jnp.maximum(y + b_ref[...], 0.0).astype(o_ref.dtype)


def spatio_conv_layer(x, a_norm, w, b, *, compute_dtype=jnp.float32):
    """relu(A_norm @ X @ W + b) over the node axis.

    x: (B, C_in, T, N) NCHW (exactly the PyTorch module's input layout).
    Returns (B, C_out, T, N) NCHW.
    compute_dtype: jnp.bfloat16 halves MXU-operand bytes on v6e/v7x (f32 accumulation and f32
                   bias/ReLU are kept either way; the strict 1e-5 test needs the f32 default).
    """
    B, C_in, T, N = x.shape
    C_out = w.shape[1]

    # Metadata-only reshape (contiguous dim merges, NOT a transpose, no extra HBM pass).
    # Lane (last) dim becomes T*N — 128 at the test shapes — so vregs/stores are dense.
    xf = x.reshape(B * C_in, T * N)          # no .astype here; cast happens in-kernel

    # Build-once per-layer operands (in a real model these are hoisted to layer construction).
    a_big = jnp.kron(jnp.eye(T, dtype=a_norm.dtype), a_norm).astype(compute_dtype)  # (T*N, T*N)
    w_kron = jnp.kron(jnp.eye(B, dtype=w.dtype), w.T).astype(compute_dtype)         # (B*C_out, B*C_in)
    b_big = jnp.tile(b.astype(jnp.float32), B).reshape(B * C_out, 1)                # f32 bias

    # Advisory cost hint for XLA's scheduler around the custom call.
    flops = 2 * (B * C_in) * (T * N) * (T * N) + 2 * (B * C_out) * (B * C_in) * (T * N)
    bytes_accessed = (
        xf.size * xf.dtype.itemsize
        + a_big.size * a_big.dtype.itemsize
        + w_kron.size * w_kron.dtype.itemsize
        + b_big.size * b_big.dtype.itemsize
        + (B * C_out) * (T * N) * x.dtype.itemsize
    )

    out = pl.pallas_call(
        functools.partial(gcn_kernel, compute_dtype=compute_dtype),
        out_shape=jax.ShapeDtypeStruct((B * C_out, T * N), x.dtype),
        grid=(1,),  # single step: everything is resident; no per-batch grid overhead
        in_specs=[
            pl.BlockSpec((T * N, T * N), lambda i: (0, 0)),          # kron(I_T, A), resident
            pl.BlockSpec((B * C_in, T * N), lambda i: (0, 0)),       # X slab (full)
            pl.BlockSpec((B * C_out, B * C_in), lambda i: (0, 0)),   # kron(I_B, W^T), resident
            pl.BlockSpec((B * C_out, 1), lambda i: (0, 0)),          # bias, resident
        ],
        out_specs=pl.BlockSpec((B * C_out, T * N), lambda i: (0, 0)),
        compiler_params=pltpu.CompilerParams(
            dimension_semantics=("arbitrary",),
            vmem_limit_bytes=32 * 1024 * 1024,   # explicit budget, safe on v5e/v6e/v7x
        ),
        cost_estimate=pl.CostEstimate(
            flops=flops, transcendentals=0, bytes_accessed=bytes_accessed
        ),
    )(a_big, xf, w_kron, b_big)

    # Metadata-only reshape back to NCHW (B, C_out, T, N) — no transpose, no HBM pass.
    return out.reshape(B, C_out, T, N)


def build_graph_norm_adj(n):
    """Deterministic undirected ring graph with self-loops, DGL norm='both' normalization."""
    idx = jnp.arange(n)
    a = jnp.zeros((n, n), jnp.float32)
    a = a.at[idx, (idx + 1) % n].set(1.0)
    a = a.at[(idx + 1) % n, idx].set(1.0)
    a = a.at[idx, idx].set(1.0)  # self-loops
    deg = jnp.clip(a.sum(axis=1), 1.0, None)
    d_inv_sqrt = 1.0 / jnp.sqrt(deg)
    return d_inv_sqrt[:, None] * a * d_inv_sqrt[None, :]


if __name__ == "__main__":
    # Small shapes consistent with the module: batch=2, c_in=4, T=8, n_nodes=16, c_out=32.
    B, C_in, T, N, C_out = 2, 4, 8, 16, 32

    key = jax.random.PRNGKey(0)
    kx, kw, kb = jax.random.split(key, 3)

    x = jax.random.normal(kx, (B, C_in, T, N), dtype=jnp.float32)

    # GraphConv.reset_parameters(): xavier_uniform_ weight (bias is zeros at init, but the
    # forward supports arbitrary bias — use a small nonzero one to exercise that path).
    bound = (6.0 / (C_in + C_out)) ** 0.5
    w = jax.random.uniform(kw, (C_in, C_out), jnp.float32, -bound, bound)
    b = 0.1 * jax.random.normal(kb, (C_out,), dtype=jnp.float32)

    a_norm = build_graph_norm_adj(N)

    y = spatio_conv_layer(x, a_norm, w, b)
    y = jax.block_until_ready(y)

    # Pure-JAX reference: relu(A_norm @ X @ W + b) on the NCHW tensor directly.
    ref = jnp.einsum("nk,bctk,co->botn", a_norm, x, w) + b[None, :, None, None]
    ref = jnp.maximum(ref, 0.0)

    assert y.shape == (B, C_out, T, N)
    assert jnp.allclose(y, ref, atol=1e-5, rtol=1e-5)

    print("KERNEL_OK")
</pallas_src>

<mosaic_0001>
module attributes {stable_mosaic.version = 11 : i64} {
  func.func @gcn_kernel(%arg0: i32, %arg1: memref<128x128xf32, #tpu.memory_space<vmem>>, %arg2: memref<8x128xf32, #tpu.memory_space<vmem>>, %arg3: memref<64x8xf32, #tpu.memory_space<vmem>>, %arg4: memref<64x1xf32, #tpu.memory_space<vmem>>, %arg5: memref<64x128xf32, #tpu.memory_space<vmem>>) attributes {dimension_semantics = [#tpu.dimension_semantics<arbitrary>], iteration_bounds = array<i64: 1>, scalar_prefetch = 0 : i64, scratch_operands = 0 : i64, tpu.core_type = #tpu.core_type<tc>, window_params = [{pipeline_mode = #tpu.pipeline_mode<synchronous>, transform_indices = @transform_0, window_bounds = array<i64: 128, 128>}, {pipeline_mode = #tpu.pipeline_mode<synchronous>, transform_indices = @transform_1, window_bounds = array<i64: 8, 128>}, {pipeline_mode = #tpu.pipeline_mode<synchronous>, transform_indices = @transform_2, window_bounds = array<i64: 64, 8>}, {pipeline_mode = #tpu.pipeline_mode<synchronous>, transform_indices = @transform_3, window_bounds = array<i64: 64, 1>}, {pipeline_mode = #tpu.pipeline_mode<synchronous>, transform_indices = @transform_4, window_bounds = array<i64: 64, 128>}]} {
    %c0 = arith.constant 0 : index
    %c0_0 = arith.constant 0 : index
    %0 = vector.load %arg2[%c0, %c0_0] : memref<8x128xf32, #tpu.memory_space<vmem>>, vector<8x128xf32>
    %c0_1 = arith.constant 0 : index
    %c0_2 = arith.constant 0 : index
    %1 = vector.load %arg1[%c0_1, %c0_2] : memref<128x128xf32, #tpu.memory_space<vmem>>, vector<128x128xf32>
    %cst = arith.constant dense<0.000000e+00> : vector<8x128xf32>
    %2 = tpu.matmul %0, %1, %cst {dimension_numbers = #tpu.dot_dimension_numbers<[1], [1], [0], [0], [0, 0, 1, 0], [], []>} : vector<8x128xf32>, vector<128x128xf32>, vector<8x128xf32> -> vector<8x128xf32>
    %c0_3 = arith.constant 0 : index
    %c0_4 = arith.constant 0 : index
    %3 = vector.load %arg3[%c0_3, %c0_4] : memref<64x8xf32, #tpu.memory_space<vmem>>, vector<64x8xf32>
    %cst_5 = arith.constant dense<0.000000e+00> : vector<64x128xf32>
    %4 = tpu.matmul %3, %2, %cst_5 {dimension_numbers = #tpu.dot_dimension_numbers<[1], [0], [0], [1], [0, 0, 1, 1], [], []>} : vector<64x8xf32>, vector<8x128xf32>, vector<64x128xf32> -> vector<64x128xf32>
    %c0_6 = arith.constant 0 : index
    %c0_7 = arith.constant 0 : index
    %5 = vector.load %arg4[%c0_6, %c0_7] : memref<64x1xf32, #tpu.memory_space<vmem>>, vector<64x1xf32>
    %6 = vector.broadcast %5 : vector<64x1xf32> to vector<64x128xf32>
    %7 = arith.addf %4, %6 : vector<64x128xf32>
    %cst_8 = arith.constant 0.000000e+00 : f32
    %8 = vector.broadcast %cst_8 : f32 to vector<64x128xf32>
    %9 = arith.maximumf %7, %8 : vector<64x128xf32>
    %c0_9 = arith.constant 0 : index
    %c0_10 = arith.constant 0 : index
    %10 = vector.load %arg5[%c0_9, %c0_10] : memref<64x128xf32, #tpu.memory_space<vmem>>, vector<64x128xf32>
    tpu.vector_store %arg5[%c0_9, %c0_10], %9 {strides = array<i32>} : memref<64x128xf32, #tpu.memory_space<vmem>>, vector<64x128xf32>,
    return
  }
  func.func @transform_0(%arg0: i32) -> (i32, i32) {
    %c0_i32 = arith.constant 0 : i32
    %c0_i32_0 = arith.constant 0 : i32
    %c0_i32_1 = arith.constant 0 : i32
    return %c0_i32, %c0_i32_0 : i32, i32
  }
  func.func @transform_1(%arg0: i32) -> (i32, i32) {
    %c0_i32 = arith.constant 0 : i32
    %c0_i32_0 = arith.constant 0 : i32
    %c0_i32_1 = arith.constant 0 : i32
    return %c0_i32, %c0_i32_0 : i32, i32
  }
  func.func @transform_2(%arg0: i32) -> (i32, i32) {
    %c0_i32 = arith.constant 0 : i32
    %c0_i32_0 = arith.constant 0 : i32
    %c0_i32_1 = arith.constant 0 : i32
    return %c0_i32, %c0_i32_0 : i32, i32
  }
  func.func @transform_3(%arg0: i32) -> (i32, i32) {
    %c0_i32 = arith.constant 0 : i32
    %c0_i32_0 = arith.constant 0 : i32
    %c0_i32_1 = arith.constant 0 : i32
    return %c0_i32, %c0_i32_0 : i32, i32
  }
  func.func @transform_4(%arg0: i32) -> (i32, i32) {
    %c0_i32 = arith.constant 0 : i32
    %c0_i32_0 = arith.constant 0 : i32
    %c0_i32_1 = arith.constant 0 : i32
    return %c0_i32, %c0_i32_0 : i32, i32
  }
}

</mosaic_0001>

<llo_original>
// kernel: tpu_custom_call.1
$region0: #{tpu_custom_call.1}
  #allocation0 [shape = 'u32[]', space=smem, size = 0x4, offset = 0x4, fixed_abs, tag = 'smem constant byte address 0x4 - core index']
  #allocation1 [shape = 'u32[144,128]{1,0:T(1,128)}', space=vmem, size = 0x12000, scoped, tag = 'internal scratch']
  %s0 = inlined_call_operand.vmem [shape: f32[128,128], index: 0, kind: input, shape index: {}]
  %s1 = inlined_call_operand.vmem [shape: f32[8,128], index: 1, kind: input, shape index: {}]
  %s2 = inlined_call_operand.vmem [shape: f32[64,8], index: 2, kind: input, shape index: {}]
  %s3 = inlined_call_operand.vmem [shape: f32[64,1], index: 3, kind: input, shape index: {}]
  %s4 = inlined_call_operand.hbm [shape: f32[64,128], index: 4, kind: output, shape index: {}]
  %s5 = sld [smem:[#allocation0]]
  $region26: #{tpu_custom_call.1} parent=0
    _
  %s7 = ssub.s32 1, %s5
  %s8 = scalar_select 0, %s7, %s5
  $region1: #{tpu_custom_call.1} parent=0
    #allocation2 [shape = 'u8[32768]{0}', space=vmem, size = 0x8000, scoped, tag = 'output window, operand 0, single buffered']
    #allocation3 [shape = 's32[1]{0}', space=sflag, size = 0x4, scoped, tag = 'scoped memory for tpu_custom_call.1']
    %9 = vsyncpa [#allocation3], 0
    // Predicated region
    $region2: #{tpu_custom_call.1} parent=1 // pred_check
      _
    $region3: #{tpu_custom_call.1} parent=1 // pred_check_branch
      %11 = sbr.rel (0) target = $region5
    $region4: #{tpu_custom_call.1} parent=1 // pred_region
      _
    $region5: #{tpu_custom_call.1} parent=1 // pred_fallthru
      _
    // Predicated region
    $region6: #{tpu_custom_call.1} parent=1 // pred_check
      _
    $region7: #{tpu_custom_call.1} parent=1 // pred_check_branch
      %13 = sbr.rel (0) target = $region9
    $region8: #{tpu_custom_call.1} parent=1 // pred_region
      _
    $region9: #{tpu_custom_call.1} parent=1 // pred_fallthru
      _
    // Predicated region
    $region10: #{tpu_custom_call.1} parent=1 // pred_check
      _
    $region11: #{tpu_custom_call.1} parent=1 // pred_check_branch
      %15 = sbr.rel (0) target = $region13
    $region12: #{tpu_custom_call.1} parent=1 // pred_region
      _
    $region13: #{tpu_custom_call.1} parent=1 // pred_fallthru
      _
    // Predicated region
    $region14: #{tpu_custom_call.1} parent=1 // pred_check
      _
    $region15: #{tpu_custom_call.1} parent=1 // pred_check_branch
      %17 = sbr.rel (0) target = $region17
    $region16: #{tpu_custom_call.1} parent=1 // pred_region
      _
    $region17: #{tpu_custom_call.1} parent=1 // pred_fallthru
      _
    %v18 = vld [vmem:[%s1] sm:$0xff]
    %v19 = vld [vmem:[%s0] sm:$0xff]
    %v20 = vld [vmem:[%s0 + $0x8] sm:$0xff]
    %v21 = vld [vmem:[%s0 + $0x10] sm:$0xff]
    %v22 = vld [vmem:[%s0 + $0x18] sm:$0xff]
    %v23 = vld [vmem:[%s0 + $0x20] sm:$0xff]
    %v24 = vld [vmem:[%s0 + $0x28] sm:$0xff]
    %v25 = vld [vmem:[%s0 + $0x30] sm:$0xff]
    %v26 = vld [vmem:[%s0 + $0x38] sm:$0xff]
    %v27 = vld [vmem:[%s0 + $0x40] sm:$0xff]
    %v28 = vld [vmem:[%s0 + $0x48] sm:$0xff]
    %v29 = vld [vmem:[%s0 + $0x50] sm:$0xff]
    %v30 = vld [vmem:[%s0 + $0x58] sm:$0xff]
    %v31 = vld [vmem:[%s0 + $0x60] sm:$0xff]
    %v32 = vld [vmem:[%s0 + $0x68] sm:$0xff]
    %v33 = vld [vmem:[%s0 + $0x70] sm:$0xff]
    %v34 = vld [vmem:[%s0 + $0x78] sm:$0xff]
    %35 = vmatprep.subr.mxu0 0.0
    %36 = vmatpush1.xpose.msra.mxu0 %v34
    %37 = vmatprep.subr.mxu0 0.0
    %38 = vmatpush1.xpose.msra.mxu0 %v33
    %39 = vmatprep.subr.mxu0 0.0
    %40 = vmatpush1.xpose.msra.mxu0 %v32
    %41 = vmatprep.subr.mxu0 0.0
    %42 = vmatpush1.xpose.msra.mxu0 %v31
    %43 = vmatprep.subr.mxu0 0.0
    %44 = vmatpush1.xpose.msra.mxu0 %v30
    %45 = vmatprep.subr.mxu0 0.0
    %46 = vmatpush1.xpose.msra.mxu0 %v29
    %47 = vmatprep.subr.mxu0 0.0
    %48 = vmatpush1.xpose.msra.mxu0 %v28
    %49 = vmatprep.subr.mxu0 0.0
    %50 = vmatpush1.xpose.msra.mxu0 %v27
    %51 = vmatprep.subr.mxu0 0.0
    %52 = vmatpush1.xpose.msra.mxu0 %v26
    %53 = vmatprep.subr.mxu0 0.0
    %54 = vmatpush1.xpose.msra.mxu0 %v25
    %55 = vmatprep.subr.mxu0 0.0
    %56 = vmatpush1.xpose.msra.mxu0 %v24
    %57 = vmatprep.subr.mxu0 0.0
    %58 = vmatpush1.xpose.msra.mxu0 %v23
    %59 = vmatprep.subr.mxu0 0.0
    %60 = vmatpush1.xpose.msra.mxu0 %v22
    %61 = vmatprep.subr.mxu0 0.0
    %62 = vmatpush1.xpose.msra.mxu0 %v21
    %63 = vmatprep.subr.mxu0 0.0
    %64 = vmatpush1.xpose.msra.mxu0 %v20
    %65 = vmatprep.subr.mxu0 0.0
    %66 = vmatpush1.xpose.msra.mxu0 %v19
    %67 = vmatprep.subr.mxu0 0.0
    %68 = vmatpush2.xpose.msra.mxu0 0.0
    %69 = vmatprep.subr.mxu0 0.0
    %70 = vmatpush2.xpose.msra.mxu0 0.0
    %71 = vmatprep.subr.mxu0 0.0
    %72 = vmatpush2.xpose.msra.mxu0 0.0
    %73 = vmatprep.subr.mxu0 0.0
    %74 = vmatpush2.xpose.msra.mxu0 0.0
    %75 = vmatprep.subr.mxu0 0.0
    %76 = vmatpush2.xpose.msra.mxu0 0.0
    %77 = vmatprep.subr.mxu0 0.0
    %78 = vmatpush2.xpose.msra.mxu0 0.0
    %79 = vmatprep.subr.mxu0 0.0
    %80 = vmatpush2.xpose.msra.mxu0 0.0
    %81 = vmatprep.subr.mxu0 0.0
    %82 = vmatpush2.xpose.msra.mxu0 0.0
    %83 = vmatprep.subr.mxu0 0.0
    %84 = vmatpush2.xpose.msra.mxu0 0.0
    %85 = vmatprep.subr.mxu0 0.0
    %86 = vmatpush2.xpose.msra.mxu0 0.0
    %87 = vmatprep.subr.mxu0 0.0
    %88 = vmatpush2.xpose.msra.mxu0 0.0
    %89 = vmatprep.subr.mxu0 0.0
    %90 = vmatpush2.xpose.msra.mxu0 0.0
    %91 = vmatprep.subr.mxu0 0.0
    %92 = vmatpush2.xpose.msra.mxu0 0.0
    %93 = vmatprep.subr.mxu0 0.0
    %94 = vmatpush2.xpose.msra.mxu0 0.0
    %95 = vmatprep.subr.mxu0 0.0
    %96 = vmatpush2.xpose.msra.mxu0 0.0
    %97 = vmatprep.subr.mxu0 0.0
    %98 = vmatpush2.xpose.msra.mxu0 0.0
    %99 = vmatprep.mubr.f32.mxu0 0.0
    %100 = vmatmul.mubr.f32.gmra.mxu0 %v18
    %v101 = vpop.f32.mrf.mxu0
    %v102 = vadd.f32 0.0, %v101
    %v103 = vpop.f32.mrf.mxu0
    %104 = vdwg.mxu0
    %v105 = vld [vmem:[%s2] sm:$0xff]
    %v106 = vld [vmem:[%s2 + $0x8] sm:$0xff]
    %v107 = vld [vmem:[%s2 + $0x10] sm:$0xff]
    %v108 = vld [vmem:[%s2 + $0x18] sm:$0xff]
    %v109 = vld [vmem:[%s2 + $0x20] sm:$0xff]
    %v110 = vld [vmem:[%s2 + $0x28] sm:$0xff]
    %v111 = vld [vmem:[%s2 + $0x30] sm:$0xff]
    %v112 = vld [vmem:[%s2 + $0x38] sm:$0xff]
    %v113 = vld [vmem:[%s3] sm:$0xff]
    %v114 = vld [vmem:[%s3 + $0x8] sm:$0xff]
    %v115 = vld [vmem:[%s3 + $0x10] sm:$0xff]
    %v116 = vld [vmem:[%s3 + $0x18] sm:$0xff]
    %v117 = vld [vmem:[%s3 + $0x20] sm:$0xff]
    %v118 = vld [vmem:[%s3 + $0x28] sm:$0xff]
    %v119 = vld [vmem:[%s3 + $0x30] sm:$0xff]
    %v120 = vld [vmem:[%s3 + $0x38] sm:$0xff]
    %122 = vset.pattern.permute.xlu0 0
    %123 = vperm.xlu0 %122, %v113
    %v124 = vpop.permute.xlu0 %123
    %127 = vset.pattern.permute.xlu0 0
    %128 = vperm.xlu0 %127, %v114
    %v129 = vpop.permute.xlu0 %128
    %132 = vset.pattern.permute.xlu0 0
    %133 = vperm.xlu0 %132, %v115
    %v134 = vpop.permute.xlu0 %133
    %137 = vset.pattern.permute.xlu0 0
    %138 = vperm.xlu0 %137, %v116
    %v139 = vpop.permute.xlu0 %138
    %142 = vset.pattern.permute.xlu0 0
    %143 = vperm.xlu0 %142, %v117
    %v144 = vpop.permute.xlu0 %143
    %147 = vset.pattern.permute.xlu0 0
    %148 = vperm.xlu0 %147, %v118
    %v149 = vpop.permute.xlu0 %148
    %152 = vset.pattern.permute.xlu0 0
    %153 = vperm.xlu0 %152, %v119
    %v154 = vpop.permute.xlu0 %153
    %157 = vset.pattern.permute.xlu0 0
    %158 = vperm.xlu0 %157, %v120
    %v159 = vpop.permute.xlu0 %158
    %vm161 = vcmask 64512
    %v163 = vsel %vm161, %v105, 0
    %v166 = vsel %vm161, %v106, 0
    %v169 = vsel %vm161, %v107, 0
    %v172 = vsel %vm161, %v108, 0
    %v175 = vsel %vm161, %v109, 0
    %v178 = vsel %vm161, %v110, 0
    %v181 = vsel %vm161, %v111, 0
    %v184 = vsel %vm161, %v112, 0
    %186 = vmatprep.subr.mxu0 0.0
    %187 = vmatpush1.msra.mxu0 0.0
    %188 = vmatprep.subr.mxu0 0.0
    %189 = vmatpush1.msra.mxu0 0.0
    %190 = vmatprep.subr.mxu0 0.0
    %191 = vmatpush1.msra.mxu0 0.0
    %192 = vmatprep.subr.mxu0 0.0
    %193 = vmatpush1.msra.mxu0 0.0
    %194 = vmatprep.subr.mxu0 0.0
    %195 = vmatpush1.msra.mxu0 0.0
    %196 = vmatprep.subr.mxu0 0.0
    %197 = vmatpush1.msra.mxu0 0.0
    %198 = vmatprep.subr.mxu0 0.0
    %199 = vmatpush1.msra.mxu0 0.0
    %200 = vmatprep.subr.mxu0 0.0
    %201 = vmatpush1.msra.mxu0 0.0
    %202 = vmatprep.subr.mxu0 0.0
    %203 = vmatpush1.msra.mxu0 0.0
    %204 = vmatprep.subr.mxu0 0.0
    %205 = vmatpush1.msra.mxu0 0.0
    %206 = vmatprep.subr.mxu0 0.0
    %207 = vmatpush1.msra.mxu0 0.0
    %208 = vmatprep.subr.mxu0 0.0
    %209 = vmatpush1.msra.mxu0 0.0
    %210 = vmatprep.subr.mxu0 0.0
    %211 = vmatpush1.msra.mxu0 0.0
    %212 = vmatprep.subr.mxu0 0.0
    %213 = vmatpush1.msra.mxu0 0.0
    %214 = vmatprep.subr.mxu0 0.0
    %215 = vmatpush1.msra.mxu0 0.0
    %216 = vmatprep.subr.mxu0 0.0
    %217 = vmatpush1.msra.mxu0 %v102
    %218 = vmatprep.subr.mxu0 0.0
    %219 = vmatpush2.msra.mxu0 0.0
    %220 = vmatprep.subr.mxu0 0.0
    %221 = vmatpush2.msra.mxu0 0.0
    %222 = vmatprep.subr.mxu0 0.0
    %223 = vmatpush2.msra.mxu0 0.0
    %224 = vmatprep.subr.mxu0 0.0
    %225 = vmatpush2.msra.mxu0 0.0
    %226 = vmatprep.subr.mxu0 0.0
    %227 = vmatpush2.msra.mxu0 0.0
    %228 = vmatprep.subr.mxu0 0.0
    %229 = vmatpush2.msra.mxu0 0.0
    %230 = vmatprep.subr.mxu0 0.0
    %231 = vmatpush2.msra.mxu0 0.0
    %232 = vmatprep.subr.mxu0 0.0
    %233 = vmatpush2.msra.mxu0 0.0
    %234 = vmatprep.subr.mxu0 0.0
    %235 = vmatpush2.msra.mxu0 0.0
    %236 = vmatprep.subr.mxu0 0.0
    %237 = vmatpush2.msra.mxu0 0.0
    %238 = vmatprep.subr.mxu0 0.0
    %239 = vmatpush2.msra.mxu0 0.0
    %240 = vmatprep.subr.mxu0 0.0
    %241 = vmatpush2.msra.mxu0 0.0
    %242 = vmatprep.subr.mxu0 0.0
    %243 = vmatpush2.msra.mxu0 0.0
    %244 = vmatprep.subr.mxu0 0.0
    %245 = vmatpush2.msra.mxu0 0.0
    %246 = vmatprep.subr.mxu0 0.0
    %247 = vmatpush2.msra.mxu0 0.0
    %248 = vmatprep.subr.mxu0 0.0
    %249 = vmatpush2.msra.mxu0 0.0
    %250 = vmatprep.mubr.f32.mxu0 0.0
    %251 = vmatmul.mubr.f32.gmra.mxu0 %v163
    %v252 = vpop.f32.mrf.mxu0
    %v253 = vadd.f32 %v124, %v252
    %v254 = vpop.f32.mrf.mxu0
    %255 = vmatprep.mubr.f32.mxu0 0.0
    %256 = vmatmul.mubr.f32.gmra.mxu0 %v166
    %v257 = vpop.f32.mrf.mxu0
    %v258 = vadd.f32 %v129, %v257
    %v259 = vpop.f32.mrf.mxu0
    %260 = vmatprep.mubr.f32.mxu0 0.0
    %261 = vmatmul.mubr.f32.gmra.mxu0 %v169
    %v262 = vpop.f32.mrf.mxu0
    %v263 = vadd.f32 %v134, %v262
    %v264 = vpop.f32.mrf.mxu0
    %265 = vmatprep.mubr.f32.mxu0 0.0
    %266 = vmatmul.mubr.f32.gmra.mxu0 %v172
    %v267 = vpop.f32.mrf.mxu0
    %v268 = vadd.f32 %v139, %v267
    %v269 = vpop.f32.mrf.mxu0
    %270 = vmatprep.mubr.f32.mxu0 0.0
    %271 = vmatmul.mubr.f32.gmra.mxu0 %v175
    %v272 = vpop.f32.mrf.mxu0
    %v273 = vadd.f32 %v144, %v272
    %v274 = vpop.f32.mrf.mxu0
    %275 = vmatprep.mubr.f32.mxu0 0.0
    %276 = vmatmul.mubr.f32.gmra.mxu0 %v178
    %v277 = vpop.f32.mrf.mxu0
    %v278 = vadd.f32 %v149, %v277
    %v279 = vpop.f32.mrf.mxu0
    %280 = vmatprep.mubr.f32.mxu0 0.0
    %281 = vmatmul.mubr.f32.gmra.mxu0 %v181
    %v282 = vpop.f32.mrf.mxu0
    %v283 = vadd.f32 %v154, %v282
    %v284 = vpop.f32.mrf.mxu0
    %285 = vmatprep.mubr.f32.mxu0 0.0
    %286 = vmatmul.mubr.f32.gmra.mxu0 %v184
    %v287 = vpop.f32.mrf.mxu0
    %v288 = vadd.f32 %v159, %v287
    %v289 = vpop.f32.mrf.mxu0
    %290 = vdwg.mxu0
    %v291 = vmax.f32 %v253, 0.0
    %v292 = vmax.f32 %v258, 0.0
    %v293 = vmax.f32 %v263, 0.0
    %v294 = vmax.f32 %v268, 0.0
    %v295 = vmax.f32 %v273, 0.0
    %v296 = vmax.f32 %v278, 0.0
    %v297 = vmax.f32 %v283, 0.0
    %v298 = vmax.f32 %v288, 0.0
    %299 = vst [vmem:[#allocation2] sm:$0xff] %v291
    %300 = vst [vmem:[#allocation2 + $0x8] sm:$0xff] %v292
    %301 = vst [vmem:[#allocation2 + $0x10] sm:$0xff] %v293
    %302 = vst [vmem:[#allocation2 + $0x18] sm:$0xff] %v294
    %303 = vst [vmem:[#allocation2 + $0x20] sm:$0xff] %v295
    %304 = vst [vmem:[#allocation2 + $0x28] sm:$0xff] %v296
    %305 = vst [vmem:[#allocation2 + $0x30] sm:$0xff] %v297
    %306 = vst [vmem:[#allocation2 + $0x38] sm:$0xff] %v298
    // Predicated region
    $region18: #{tpu_custom_call.1} parent=1 // pred_check
      _
    $region19: #{tpu_custom_call.1} parent=1 // pred_check_branch
      %308 = sbr.rel (0) target = $region21
    $region20: #{tpu_custom_call.1} parent=1 // pred_region
      %s310 = ssub.s32 1024, 1024
      %311 = vsyncadd [#allocation3], %s310
      %s312 = sshll.u32 [#allocation2], 4
      %s313 = int_to_ptr.vmem [resolvable:$true] %s312
      %318 = dma.vmem_to_hbm [thread:$0]  %s313, 1024, %s4, [#allocation3], 128, 128, 8
    $region21: #{tpu_custom_call.1} parent=1 // pred_fallthru
      _
    // Predicated region
    $region22: #{tpu_custom_call.1} parent=1 // pred_check
      _
    $region23: #{tpu_custom_call.1} parent=1 // pred_check_branch
      %320 = sbr.rel (0) target = $region25
    $region24: #{tpu_custom_call.1} parent=1 // pred_region
      %321 = dma.done [#allocation3], 1024
    $region25: #{tpu_custom_call.1} parent=1 // pred_fallthru
      _
    %322 = vsyncpa [#allocation3], 1

</llo_original>
